<compile_context>
chip_gen: v6e
topology: v6e:2x2x1
jax: 0.10.0
libtpu: 0.0.40
codegen_flags: <defaults>
</compile_context>

<pallas_src>
import jax
import jax.numpy as jnp
from jax.experimental import pallas as pl
from jax.experimental.pallas import tpu as pltpu


def _round_up(x, m):
    return ((x + m - 1) // m) * m


# ---------------------------------------------------------------------------
# Kernel 1: row-tiled  XW1_scaled = diag(d) @ (X @ W1)
#   (right D^{-1/2} factor folded into the XW rows, per perf review)
# ---------------------------------------------------------------------------
def _xw_kernel(x_ref, w_ref, dr_ref, o_ref):
    acc = jnp.dot(x_ref[...], w_ref[...], preferred_element_type=jnp.float32)
    o_ref[...] = (dr_ref[...] * acc).astype(o_ref.dtype)


# ---------------------------------------------------------------------------
# Kernel 2: fused layer-1 aggregation + layer-2 feature transform
#   h  = relu(d_row * (P @ XW1_scaled) + b1)
#   Y  = (d_row * h) @ W2          (right scale of layer-2 pre-applied)
#   (h never leaves VMEM / never hits HBM)
# ---------------------------------------------------------------------------
def _agg1_fused_kernel(p_ref, xw_ref, dl_ref, b1_ref, w2_ref, o_ref):
    acc = jnp.dot(p_ref[...].astype(jnp.bfloat16), xw_ref[...],
                  preferred_element_type=jnp.float32)
    h = jnp.maximum(dl_ref[...] * acc + b1_ref[...], 0.0)         # f32 epilogue
    h_scaled = (dl_ref[...] * h).astype(jnp.bfloat16)
    o_ref[...] = jnp.dot(h_scaled, w2_ref[...],
                         preferred_element_type=jnp.float32).astype(o_ref.dtype)


# ---------------------------------------------------------------------------
# Kernel 3: layer-2 aggregation   out = d_row * (P @ Y) + b2
# ---------------------------------------------------------------------------
def _agg2_kernel(p_ref, y_ref, dl_ref, b2_ref, o_ref):
    acc = jnp.dot(p_ref[...].astype(jnp.bfloat16), y_ref[...],
                  preferred_element_type=jnp.float32)
    o_ref[...] = (dl_ref[...] * acc + b2_ref[...]).astype(o_ref.dtype)


# ---------------------------------------------------------------------------
# Fused 2-layer GCN forward (eval mode; dropout p=0.5 is identity).
# ---------------------------------------------------------------------------
def gcn_forward(a_pattern, d_inv_sqrt, x, w1, b1, w2, b2, *, tm=256):
    n, f = x.shape
    h_dim = w1.shape[1]
    c_dim = w2.shape[1]

    n_pad = _round_up(n, 128)          # shared by A rows AND columns (no tm coupling)
    f_pad = _round_up(f, 128)
    h_pad = _round_up(h_dim, 128)
    c_pad = _round_up(c_dim, 128)

    # Adaptive row tile: never exceeds the graph, always divides n_pad.
    tm = min(tm, n_pad)
    if n_pad % tm != 0:
        tm = 128
    grid = (n_pad // tm,)

    def pad2(m, rows, cols, dtype):
        return jnp.pad(
            m, ((0, rows - m.shape[0]), (0, cols - m.shape[1]))
        ).astype(dtype)

    p_p = pad2(a_pattern, n_pad, n_pad, jnp.int8)                 # exact 0/1/2 pattern
    d_p = pad2(d_inv_sqrt.reshape(-1, 1), n_pad, 1, jnp.float32)  # f32 scales (pad rows -> 0)
    x_p = pad2(x, n_pad, f_pad, jnp.bfloat16)
    w1_p = pad2(w1, f_pad, h_pad, jnp.bfloat16)
    b1_p = pad2(b1.reshape(1, -1), 1, h_pad, jnp.float32)
    w2_p = pad2(w2, h_pad, c_pad, jnp.bfloat16)
    b2_p = pad2(b2.reshape(1, -1), 1, c_pad, jnp.float32)

    cparams = pltpu.CompilerParams(dimension_semantics=("parallel",))

    # 1) XW1_scaled = diag(d) @ (X @ W1)
    xw1 = pl.pallas_call(
        _xw_kernel,
        out_shape=jax.ShapeDtypeStruct((n_pad, h_pad), jnp.bfloat16),
        grid=grid,
        in_specs=[
            pl.BlockSpec((tm, f_pad), lambda i: (i, 0)),     # X row slab (streamed)
            pl.BlockSpec((f_pad, h_pad), lambda i: (0, 0)),  # W1 (resident)
            pl.BlockSpec((tm, 1), lambda i: (i, 0)),         # right scale rows
        ],
        out_specs=pl.BlockSpec((tm, h_pad), lambda i: (i, 0)),
        compiler_params=cparams,
    )(x_p, w1_p, d_p)

    # 2) Y = diag(d) @ relu(diag(d) @ P @ XW1_scaled + b1) @ W2   (h stays in VMEM)
    y = pl.pallas_call(
        _agg1_fused_kernel,
        out_shape=jax.ShapeDtypeStruct((n_pad, c_pad), jnp.bfloat16),
        grid=grid,
        in_specs=[
            pl.BlockSpec((tm, n_pad), lambda i: (i, 0)),     # P row slab, int8 (streamed)
            pl.BlockSpec((n_pad, h_pad), lambda i: (0, 0)),  # XW1_scaled (resident)
            pl.BlockSpec((tm, 1), lambda i: (i, 0)),         # left scale rows
            pl.BlockSpec((1, h_pad), lambda i: (0, 0)),      # b1 (resident)
            pl.BlockSpec((h_pad, c_pad), lambda i: (0, 0)),  # W2 (resident)
        ],
        out_specs=pl.BlockSpec((tm, c_pad), lambda i: (i, 0)),
        compiler_params=cparams,
    )(p_p, xw1, d_p, b1_p, w2_p)

    # 3) out = diag(d) @ P @ Y + b2
    out = pl.pallas_call(
        _agg2_kernel,
        out_shape=jax.ShapeDtypeStruct((n_pad, c_pad), jnp.float32),
        grid=grid,
        in_specs=[
            pl.BlockSpec((tm, n_pad), lambda i: (i, 0)),     # P row slab, int8 (streamed)
            pl.BlockSpec((n_pad, c_pad), lambda i: (0, 0)),  # Y (resident)
            pl.BlockSpec((tm, 1), lambda i: (i, 0)),         # left scale rows
            pl.BlockSpec((1, c_pad), lambda i: (0, 0)),      # b2 (resident)
        ],
        out_specs=pl.BlockSpec((tm, c_pad), lambda i: (i, 0)),
        compiler_params=cparams,
    )(p_p, y, d_p, b2_p)

    # Dropout(p=0.5, training=False) -> identity between the layers.
    # TODO(synk): training-mode dropout (pltpu.prng_random_bits mask) not implemented.

    return out[:n, :c_dim]


# ---------------------------------------------------------------------------
# Plain-JAX glue: edge_index -> (A + I) pattern and D^{-1/2}, following PyG
# gcn_norm for unweighted graphs (scatter-add edges, drop existing self-loops,
# add weight-1 self-loops for every node).  Dense is fine at Cora-scale N;
# huge sparse graphs would need a gather/segment-sum formulation instead.
# ---------------------------------------------------------------------------
def gcn_graph(edge_index, num_nodes):
    src, dst = edge_index[0], edge_index[1]
    a = jnp.zeros((num_nodes, num_nodes), jnp.float32)
    a = a.at[dst, src].add(1.0)                       # message src -> dst (keeps multi-edges)
    eye = jnp.eye(num_nodes, dtype=jnp.float32)
    a = a * (1.0 - eye) + eye                         # self-loop weight exactly 1 per node
    deg = jnp.sum(a, axis=1)
    d_inv_sqrt = jnp.where(deg > 0, 1.0 / jnp.sqrt(deg), 0.0)
    return a, d_inv_sqrt


# ---------------------------------------------------------------------------
# Reference (pure JAX, float32) for correctness check
# ---------------------------------------------------------------------------
def gcn_ref(a_norm, x, w1, b1, w2, b2):
    h = jnp.maximum(a_norm @ (x @ w1) + b1, 0.0)
    return a_norm @ (h @ w2) + b2


if __name__ == "__main__":
    # Small synthetic "Cora-like" problem.
    N = 16          # num nodes
    F = 16          # num_features
    H = 32          # hidden_channels
    C = 8           # num_classes
    E = 40          # num (directed) edges before symmetrization

    key = jax.random.PRNGKey(0)
    k_x, k_e, k_w1, k_b1, k_w2, k_b2 = jax.random.split(key, 6)

    # Node features (row-normalized, mimicking NormalizeFeatures()).
    x = jax.random.uniform(k_x, (N, F), jnp.float32)
    x = x / jnp.maximum(jnp.sum(x, axis=1, keepdims=True), 1e-12)

    # Random undirected edges -> directed edge_index (2, 2E).
    ends = jax.random.randint(k_e, (2, E), 0, N)
    edge_index = jnp.concatenate(
        [ends, jnp.stack([ends[1], ends[0]])], axis=1).astype(jnp.int32)

    # Deterministic parameter init (glorot-ish), shapes from GCNConv.
    def glorot(k, shape):
        fan_in, fan_out = shape
        lim = jnp.sqrt(6.0 / (fan_in + fan_out))
        return jax.random.uniform(k, shape, jnp.float32, -lim, lim)

    w1 = glorot(k_w1, (F, H))
    b1 = 0.1 * jax.random.normal(k_b1, (1, H), jnp.float32)
    w2 = glorot(k_w2, (H, C))
    b2 = 0.1 * jax.random.normal(k_b2, (1, C), jnp.float32)

    a_pattern, d_inv_sqrt = gcn_graph(edge_index, N)

    out = jax.jit(gcn_forward)(a_pattern, d_inv_sqrt, x, w1, b1, w2, b2)
    out = jax.block_until_ready(out)

    a_norm = d_inv_sqrt[:, None] * a_pattern * d_inv_sqrt[None, :]
    ref = gcn_ref(a_norm, x, w1, b1, w2, b2)
    assert out.shape == (N, C)
    err = float(jnp.max(jnp.abs(out - ref)))
    # bf16 matmul inputs with f32 accumulation and exact int8 adjacency ->
    # bf16-appropriate tolerance.
    assert err < 5e-2, f"max abs err {err}"

    print("KERNEL_OK")
</pallas_src>

<mosaic_0001>
module attributes {stable_mosaic.version = 11 : i64} {
  func.func @_xw_kernel(%arg0: i32, %arg1: memref<128x128xbf16, #tpu.memory_space<vmem>>, %arg2: memref<128x128xbf16, #tpu.memory_space<vmem>>, %arg3: memref<128x1xf32, #tpu.memory_space<vmem>>, %arg4: memref<128x128xbf16, #tpu.memory_space<vmem>>) attributes {dimension_semantics = [#tpu.dimension_semantics<parallel>], iteration_bounds = array<i64: 1>, scalar_prefetch = 0 : i64, scratch_operands = 0 : i64, tpu.core_type = #tpu.core_type<tc>, window_params = [{transform_indices = @transform_0, window_bounds = array<i64: 128, 128>}, {pipeline_mode = #tpu.pipeline_mode<synchronous>, transform_indices = @transform_1, window_bounds = array<i64: 128, 128>}, {transform_indices = @transform_2, window_bounds = array<i64: 128, 1>}, {transform_indices = @transform_3, window_bounds = array<i64: 128, 128>}]} {
    %c0 = arith.constant 0 : index
    %c0_0 = arith.constant 0 : index
    %0 = vector.load %arg1[%c0, %c0_0] : memref<128x128xbf16, #tpu.memory_space<vmem>>, vector<128x128xbf16>
    %c0_1 = arith.constant 0 : index
    %c0_2 = arith.constant 0 : index
    %1 = vector.load %arg2[%c0_1, %c0_2] : memref<128x128xbf16, #tpu.memory_space<vmem>>, vector<128x128xbf16>
    %cst = arith.constant dense<0.000000e+00> : vector<128x128xf32>
    %2 = tpu.matmul %0, %1, %cst {dimension_numbers = #tpu.dot_dimension_numbers<[1], [0], [0], [1], [0, 0, 1, 1], [], []>} : vector<128x128xbf16>, vector<128x128xbf16>, vector<128x128xf32> -> vector<128x128xf32>
    %c0_3 = arith.constant 0 : index
    %c0_4 = arith.constant 0 : index
    %3 = vector.load %arg3[%c0_3, %c0_4] : memref<128x1xf32, #tpu.memory_space<vmem>>, vector<128x1xf32>
    %4 = vector.broadcast %3 : vector<128x1xf32> to vector<128x128xf32>
    %5 = arith.mulf %4, %2 : vector<128x128xf32>
    %6 = arith.truncf %5 : vector<128x128xf32> to vector<128x128xbf16>
    %c0_5 = arith.constant 0 : index
    %c0_6 = arith.constant 0 : index
    %7 = vector.load %arg4[%c0_5, %c0_6] : memref<128x128xbf16, #tpu.memory_space<vmem>>, vector<128x128xbf16>
    tpu.vector_store %arg4[%c0_5, %c0_6], %6 {strides = array<i32>} : memref<128x128xbf16, #tpu.memory_space<vmem>>, vector<128x128xbf16>,
    return
  }
  func.func @transform_0(%arg0: i32) -> (i32, i32) {
    %c0_i32 = arith.constant 0 : i32
    %c0_i32_0 = arith.constant 0 : i32
    return %arg0, %c0_i32 : i32, i32
  }
  func.func @transform_1(%arg0: i32) -> (i32, i32) {
    %c0_i32 = arith.constant 0 : i32
    %c0_i32_0 = arith.constant 0 : i32
    %c0_i32_1 = arith.constant 0 : i32
    return %c0_i32, %c0_i32_0 : i32, i32
  }
  func.func @transform_2(%arg0: i32) -> (i32, i32) {
    %c0_i32 = arith.constant 0 : i32
    %c0_i32_0 = arith.constant 0 : i32
    return %arg0, %c0_i32 : i32, i32
  }
  func.func @transform_3(%arg0: i32) -> (i32, i32) {
    %c0_i32 = arith.constant 0 : i32
    %c0_i32_0 = arith.constant 0 : i32
    return %arg0, %c0_i32 : i32, i32
  }
}

module attributes {stable_mosaic.version = 11 : i64} {
  func.func @_agg1_fused_kernel(%arg0: i32, %arg1: memref<128x128xi8, #tpu.memory_space<vmem>>, %arg2: memref<128x128xbf16, #tpu.memory_space<vmem>>, %arg3: memref<128x1xf32, #tpu.memory_space<vmem>>, %arg4: memref<1x128xf32, #tpu.memory_space<vmem>>, %arg5: memref<128x128xbf16, #tpu.memory_space<vmem>>, %arg6: memref<128x128xbf16, #tpu.memory_space<vmem>>) attributes {dimension_semantics = [#tpu.dimension_semantics<parallel>], iteration_bounds = array<i64: 1>, scalar_prefetch = 0 : i64, scratch_operands = 0 : i64, tpu.core_type = #tpu.core_type<tc>, window_params = [{transform_indices = @transform_0, window_bounds = array<i64: 128, 128>}, {pipeline_mode = #tpu.pipeline_mode<synchronous>, transform_indices = @transform_1, window_bounds = array<i64: 128, 128>}, {transform_indices = @transform_2, window_bounds = array<i64: 128, 1>}, {pipeline_mode = #tpu.pipeline_mode<synchronous>, transform_indices = @transform_3, window_bounds = array<i64: 1, 128>}, {pipeline_mode = #tpu.pipeline_mode<synchronous>, transform_indices = @transform_4, window_bounds = array<i64: 128, 128>}, {transform_indices = @transform_5, window_bounds = array<i64: 128, 128>}]} {
    %c0 = arith.constant 0 : index
    %c0_0 = arith.constant 0 : index
    %0 = vector.load %arg1[%c0, %c0_0] : memref<128x128xi8, #tpu.memory_space<vmem>>, vector<128x128xi8>
    %1 = arith.sitofp %0 : vector<128x128xi8> to vector<128x128xbf16>
    %c0_1 = arith.constant 0 : index
    %c0_2 = arith.constant 0 : index
    %2 = vector.load %arg2[%c0_1, %c0_2] : memref<128x128xbf16, #tpu.memory_space<vmem>>, vector<128x128xbf16>
    %cst = arith.constant dense<0.000000e+00> : vector<128x128xf32>
    %3 = tpu.matmul %1, %2, %cst {dimension_numbers = #tpu.dot_dimension_numbers<[1], [0], [0], [1], [0, 0, 1, 1], [], []>} : vector<128x128xbf16>, vector<128x128xbf16>, vector<128x128xf32> -> vector<128x128xf32>
    %c0_3 = arith.constant 0 : index
    %c0_4 = arith.constant 0 : index
    %4 = vector.load %arg3[%c0_3, %c0_4] : memref<128x1xf32, #tpu.memory_space<vmem>>, vector<128x1xf32>
    %5 = vector.broadcast %4 : vector<128x1xf32> to vector<128x128xf32>
    %6 = arith.mulf %5, %3 : vector<128x128xf32>
    %c0_5 = arith.constant 0 : index
    %c0_6 = arith.constant 0 : index
    %7 = vector.load %arg4[%c0_5, %c0_6] : memref<1x128xf32, #tpu.memory_space<vmem>>, vector<1x128xf32>
    %8 = vector.broadcast %7 : vector<1x128xf32> to vector<128x128xf32>
    %9 = arith.addf %6, %8 : vector<128x128xf32>
    %cst_7 = arith.constant 0.000000e+00 : f32
    %10 = vector.broadcast %cst_7 : f32 to vector<128x128xf32>
    %11 = arith.maximumf %9, %10 : vector<128x128xf32>
    %c0_8 = arith.constant 0 : index
    %c0_9 = arith.constant 0 : index
    %12 = vector.load %arg3[%c0_8, %c0_9] : memref<128x1xf32, #tpu.memory_space<vmem>>, vector<128x1xf32>
    %13 = vector.broadcast %12 : vector<128x1xf32> to vector<128x128xf32>
    %14 = arith.mulf %13, %11 : vector<128x128xf32>
    %15 = arith.truncf %14 : vector<128x128xf32> to vector<128x128xbf16>
    %c0_10 = arith.constant 0 : index
    %c0_11 = arith.constant 0 : index
    %16 = vector.load %arg5[%c0_10, %c0_11] : memref<128x128xbf16, #tpu.memory_space<vmem>>, vector<128x128xbf16>
    %cst_12 = arith.constant dense<0.000000e+00> : vector<128x128xf32>
    %17 = tpu.matmul %15, %16, %cst_12 {dimension_numbers = #tpu.dot_dimension_numbers<[1], [0], [0], [1], [0, 0, 1, 1], [], []>} : vector<128x128xbf16>, vector<128x128xbf16>, vector<128x128xf32> -> vector<128x128xf32>
    %18 = arith.truncf %17 : vector<128x128xf32> to vector<128x128xbf16>
    %c0_13 = arith.constant 0 : index
    %c0_14 = arith.constant 0 : index
    %19 = vector.load %arg6[%c0_13, %c0_14] : memref<128x128xbf16, #tpu.memory_space<vmem>>, vector<128x128xbf16>
    tpu.vector_store %arg6[%c0_13, %c0_14], %18 {strides = array<i32>} : memref<128x128xbf16, #tpu.memory_space<vmem>>, vector<128x128xbf16>,
    return
  }
  func.func @transform_0(%arg0: i32) -> (i32, i32) {
    %c0_i32 = arith.constant 0 : i32
    %c0_i32_0 = arith.constant 0 : i32
    return %arg0, %c0_i32 : i32, i32
  }
  func.func @transform_1(%arg0: i32) -> (i32, i32) {
    %c0_i32 = arith.constant 0 : i32
    %c0_i32_0 = arith.constant 0 : i32
    %c0_i32_1 = arith.constant 0 : i32
    return %c0_i32, %c0_i32_0 : i32, i32
  }
  func.func @transform_2(%arg0: i32) -> (i32, i32) {
    %c0_i32 = arith.constant 0 : i32
    %c0_i32_0 = arith.constant 0 : i32
    return %arg0, %c0_i32 : i32, i32
  }
  func.func @transform_3(%arg0: i32) -> (i32, i32) {
    %c0_i32 = arith.constant 0 : i32
    %c0_i32_0 = arith.constant 0 : i32
    %c0_i32_1 = arith.constant 0 : i32
    return %c0_i32, %c0_i32_0 : i32, i32
  }
  func.func @transform_4(%arg0: i32) -> (i32, i32) {
    %c0_i32 = arith.constant 0 : i32
    %c0_i32_0 = arith.constant 0 : i32
    %c0_i32_1 = arith.constant 0 : i32
    return %c0_i32, %c0_i32_0 : i32, i32
  }
  func.func @transform_5(%arg0: i32) -> (i32, i32) {
    %c0_i32 = arith.constant 0 : i32
    %c0_i32_0 = arith.constant 0 : i32
    return %arg0, %c0_i32 : i32, i32
  }
}

module attributes {stable_mosaic.version = 11 : i64} {
  func.func @_agg2_kernel(%arg0: i32, %arg1: memref<128x128xi8, #tpu.memory_space<vmem>>, %arg2: memref<128x128xbf16, #tpu.memory_space<vmem>>, %arg3: memref<128x1xf32, #tpu.memory_space<vmem>>, %arg4: memref<1x128xf32, #tpu.memory_space<vmem>>, %arg5: memref<128x128xf32, #tpu.memory_space<vmem>>) attributes {dimension_semantics = [#tpu.dimension_semantics<parallel>], iteration_bounds = array<i64: 1>, scalar_prefetch = 0 : i64, scratch_operands = 0 : i64, tpu.core_type = #tpu.core_type<tc>, window_params = [{transform_indices = @transform_0, window_bounds = array<i64: 128, 128>}, {pipeline_mode = #tpu.pipeline_mode<synchronous>, transform_indices = @transform_1, window_bounds = array<i64: 128, 128>}, {transform_indices = @transform_2, window_bounds = array<i64: 128, 1>}, {pipeline_mode = #tpu.pipeline_mode<synchronous>, transform_indices = @transform_3, window_bounds = array<i64: 1, 128>}, {transform_indices = @transform_4, window_bounds = array<i64: 128, 128>}]} {
    %c0 = arith.constant 0 : index
    %c0_0 = arith.constant 0 : index
    %0 = vector.load %arg1[%c0, %c0_0] : memref<128x128xi8, #tpu.memory_space<vmem>>, vector<128x128xi8>
    %1 = arith.sitofp %0 : vector<128x128xi8> to vector<128x128xbf16>
    %c0_1 = arith.constant 0 : index
    %c0_2 = arith.constant 0 : index
    %2 = vector.load %arg2[%c0_1, %c0_2] : memref<128x128xbf16, #tpu.memory_space<vmem>>, vector<128x128xbf16>
    %cst = arith.constant dense<0.000000e+00> : vector<128x128xf32>
    %3 = tpu.matmul %1, %2, %cst {dimension_numbers = #tpu.dot_dimension_numbers<[1], [0], [0], [1], [0, 0, 1, 1], [], []>} : vector<128x128xbf16>, vector<128x128xbf16>, vector<128x128xf32> -> vector<128x128xf32>
    %c0_3 = arith.constant 0 : index
    %c0_4 = arith.constant 0 : index
    %4 = vector.load %arg3[%c0_3, %c0_4] : memref<128x1xf32, #tpu.memory_space<vmem>>, vector<128x1xf32>
    %5 = vector.broadcast %4 : vector<128x1xf32> to vector<128x128xf32>
    %6 = arith.mulf %5, %3 : vector<128x128xf32>
    %c0_5 = arith.constant 0 : index
    %c0_6 = arith.constant 0 : index
    %7 = vector.load %arg4[%c0_5, %c0_6] : memref<1x128xf32, #tpu.memory_space<vmem>>, vector<1x128xf32>
    %8 = vector.broadcast %7 : vector<1x128xf32> to vector<128x128xf32>
    %9 = arith.addf %6, %8 : vector<128x128xf32>
    %c0_7 = arith.constant 0 : index
    %c0_8 = arith.constant 0 : index
    %10 = vector.load %arg5[%c0_7, %c0_8] : memref<128x128xf32, #tpu.memory_space<vmem>>, vector<128x128xf32>
    tpu.vector_store %arg5[%c0_7, %c0_8], %9 {strides = array<i32>} : memref<128x128xf32, #tpu.memory_space<vmem>>, vector<128x128xf32>,
    return
  }
  func.func @transform_0(%arg0: i32) -> (i32, i32) {
    %c0_i32 = arith.constant 0 : i32
    %c0_i32_0 = arith.constant 0 : i32
    return %arg0, %c0_i32 : i32, i32
  }
  func.func @transform_1(%arg0: i32) -> (i32, i32) {
    %c0_i32 = arith.constant 0 : i32
    %c0_i32_0 = arith.constant 0 : i32
    %c0_i32_1 = arith.constant 0 : i32
    return %c0_i32, %c0_i32_0 : i32, i32
  }
  func.func @transform_2(%arg0: i32) -> (i32, i32) {
    %c0_i32 = arith.constant 0 : i32
    %c0_i32_0 = arith.constant 0 : i32
    return %arg0, %c0_i32 : i32, i32
  }
  func.func @transform_3(%arg0: i32) -> (i32, i32) {
    %c0_i32 = arith.constant 0 : i32
    %c0_i32_0 = arith.constant 0 : i32
    %c0_i32_1 = arith.constant 0 : i32
    return %c0_i32, %c0_i32_0 : i32, i32
  }
  func.func @transform_4(%arg0: i32) -> (i32, i32) {
    %c0_i32 = arith.constant 0 : i32
    %c0_i32_0 = arith.constant 0 : i32
    return %arg0, %c0_i32 : i32, i32
  }
}

</mosaic_0001>

<llo_original>
// kernel: gcn_forward.5
$region0: #{gcn_forward.5}
  #allocation0 [shape = 'u32[]', space=smem, size = 0x4, offset = 0x4, fixed_abs, tag = 'smem constant byte address 0x4 - core index']
  #allocation1 [shape = 'u32[144,128]{1,0:T(1,128)}', space=vmem, size = 0x12000, scoped, tag = 'internal scratch']
  %s0 = inlined_call_operand.vmem [shape: s8[128,128], index: 0, kind: input, shape index: {}]
  %s1 = inlined_call_operand.vmem [shape: bf16[128,128], index: 1, kind: input, shape index: {}]
  %s2 = inlined_call_operand.vmem [shape: f32[128,1], index: 2, kind: input, shape index: {}]
  %s3 = inlined_call_operand.vmem [shape: f32[1,128], index: 3, kind: input, shape index: {}]
  %s4 = inlined_call_operand.vmem [shape: f32[128,128], index: 4, kind: output, shape index: {}]
  %s5 = sld [smem:[#allocation0]]
  $region26: #{gcn_forward.5} parent=0
    _
  %s7 = ssub.s32 1, %s5
  %s8 = scalar_select 0, %s7, %s5
  // Predicated region
  $region2: #{gcn_forward.5} parent=0 // pred_check
    _
  $region3: #{gcn_forward.5} parent=0 // pred_check_branch
    %10 = sbr.rel (0) target = $region5
  $region4: #{gcn_forward.5} parent=0 // pred_region
    _
  $region5: #{gcn_forward.5} parent=0 // pred_fallthru
    _
  // Predicated region
  $region6: #{gcn_forward.5} parent=0 // pred_check
    _
  $region7: #{gcn_forward.5} parent=0 // pred_check_branch
    %12 = sbr.rel (0) target = $region9
  $region8: #{gcn_forward.5} parent=0 // pred_region
    _
  $region9: #{gcn_forward.5} parent=0 // pred_fallthru
    _
  // Predicated region
  $region10: #{gcn_forward.5} parent=0 // pred_check
    _
  $region11: #{gcn_forward.5} parent=0 // pred_check_branch
    %14 = sbr.rel (0) target = $region13
  $region12: #{gcn_forward.5} parent=0 // pred_region
    _
  $region13: #{gcn_forward.5} parent=0 // pred_fallthru
    _
  // Predicated region
  $region14: #{gcn_forward.5} parent=0 // pred_check
    _
  $region15: #{gcn_forward.5} parent=0 // pred_check_branch
    %16 = sbr.rel (0) target = $region17
  $region16: #{gcn_forward.5} parent=0 // pred_region
    _
  $region17: #{gcn_forward.5} parent=0 // pred_fallthru
    _
  %v18 = vld [vmem:[%s0] sm:$0xff]
  %v19 = vld [vmem:[%s0 + $0x8] sm:$0xff]
  %v20 = vld [vmem:[%s0 + $0x10] sm:$0xff]
  %v21 = vld [vmem:[%s0 + $0x18] sm:$0xff]
  %v22 = vunpack.c.l.s8.bf16 %v18
  %v23 = vunpack.c.h.s8.bf16 %v18
  %v24 = vunpack.c.l.s8.bf16 %v19
  %v25 = vunpack.c.h.s8.bf16 %v19
  %v26 = vunpack.c.l.s8.bf16 %v20
  %v27 = vunpack.c.h.s8.bf16 %v20
  %v28 = vunpack.c.l.s8.bf16 %v21
  %v29 = vunpack.c.h.s8.bf16 %v21
  %v30 = vld [vmem:[%s1] sm:$0xf]
  %v31 = vld [vmem:[%s1 + $0x4] sm:$0xf]
  %v32 = vld [vmem:[%s1 + $0x8] sm:$0xf]
  %v33 = vld [vmem:[%s1 + $0xc] sm:$0xf]
  %v34 = vld [vmem:[%s1 + $0x10] sm:$0xf]
  %v35 = vld [vmem:[%s1 + $0x14] sm:$0xf]
  %v36 = vld [vmem:[%s1 + $0x18] sm:$0xf]
  %v37 = vld [vmem:[%s1 + $0x1c] sm:$0xf]
  %v38 = vld [vmem:[%s1 + $0x20] sm:$0xf]
  %v39 = vld [vmem:[%s1 + $0x24] sm:$0xf]
  %v40 = vld [vmem:[%s1 + $0x28] sm:$0xf]
  %v41 = vld [vmem:[%s1 + $0x2c] sm:$0xf]
  %v42 = vld [vmem:[%s1 + $0x30] sm:$0xf]
  %v43 = vld [vmem:[%s1 + $0x34] sm:$0xf]
  %v44 = vld [vmem:[%s1 + $0x38] sm:$0xf]
  %v45 = vld [vmem:[%s1 + $0x3c] sm:$0xf]
  %v62 = vunpack.c.l.b16 %v30
  %v63 = vunpack.c.l.b16 %v31
  %v64 = vunpack.c.l.b16 %v32
  %v65 = vunpack.c.l.b16 %v33
  %v66 = vunpack.c.l.b16 %v34
  %v67 = vunpack.c.l.b16 %v35
  %v68 = vunpack.c.l.b16 %v36
  %v69 = vunpack.c.l.b16 %v37
  %v70 = vunpack.c.l.b16 %v38
  %v71 = vunpack.c.l.b16 %v39
  %v72 = vunpack.c.l.b16 %v40
  %v73 = vunpack.c.l.b16 %v41
  %v74 = vunpack.c.l.b16 %v42
  %v75 = vunpack.c.l.b16 %v43
  %v76 = vunpack.c.l.b16 %v44
  %v77 = vunpack.c.l.b16 %v45
  %v78 = vpack.c.b16 %v63, %v62
  %v79 = vpack.c.b16 %v65, %v64
  %v80 = vpack.c.b16 %v67, %v66
  %v81 = vpack.c.b16 %v69, %v68
  %v82 = vpack.c.b16 %v71, %v70
  %v83 = vpack.c.b16 %v73, %v72
  %v84 = vpack.c.b16 %v75, %v74
  %v85 = vpack.c.b16 %v77, %v76
  %94 = vmatprep.subr.bf16.mxu0 0
  %95 = vmatpush1.bf16.msra.mxu0 %v85
  %96 = vmatprep.subr.bf16.mxu0 0
  %97 = vmatpush1.bf16.msra.mxu0 %v84
  %98 = vmatprep.subr.bf16.mxu0 0
  %99 = vmatpush1.bf16.msra.mxu0 %v83
  %100 = vmatprep.subr.bf16.mxu0 0
  %101 = vmatpush1.bf16.msra.mxu0 %v82
  %102 = vmatprep.subr.bf16.mxu0 0
  %103 = vmatpush1.bf16.msra.mxu0 %v81
  %104 = vmatprep.subr.bf16.mxu0 0
  %105 = vmatpush1.bf16.msra.mxu0 %v80
  %106 = vmatprep.subr.bf16.mxu0 0
  %107 = vmatpush1.bf16.msra.mxu0 %v79
  %108 = vmatprep.subr.bf16.mxu0 0
  %109 = vmatpush1.bf16.msra.mxu0 %v78
  %110 = vmatprep.subr.bf16.mxu0 0
  %111 = vmatpush2.bf16.msra.mxu0 0
  %112 = vmatprep.subr.bf16.mxu0 0
  %113 = vmatpush2.bf16.msra.mxu0 0
  %114 = vmatprep.subr.bf16.mxu0 0
  %115 = vmatpush2.bf16.msra.mxu0 0
  %116 = vmatprep.subr.bf16.mxu0 0
  %117 = vmatpush2.bf16.msra.mxu0 0
  %118 = vmatprep.subr.bf16.mxu0 0
  %119 = vmatpush2.bf16.msra.mxu0 0
  %120 = vmatprep.subr.bf16.mxu0 0
  %121 = vmatpush2.bf16.msra.mxu0 0
  %122 = vmatprep.subr.bf16.mxu0 0
  %123 = vmatpush2.bf16.msra.mxu0 0
  %124 = vmatprep.subr.bf16.mxu0 0
  %125 = vmatpush2.bf16.msra.mxu0 0
  %126 = vmatprep.mubr.bf16.mxu0 0
  %127 = vmatmul.mubr.bf16.gmra.mxu0 %v22
  %v128 = vpop.f32.mrf.mxu0
  %v129 = vadd.f32 0.0, %v128
  %v130 = vpop.f32.mrf.mxu0
  %v131 = vpop.f32.mrf.mxu0
  %v132 = vadd.f32 0.0, %v131
  %v133 = vpop.f32.mrf.mxu0
  %134 = vmatprep.mubr.bf16.mxu0 0
  %135 = vmatmul.mubr.bf16.gmra.mxu0 %v23
  %v136 = vpop.f32.mrf.mxu0
  %v137 = vadd.f32 0.0, %v136
  %v138 = vpop.f32.mrf.mxu0
  %v139 = vpop.f32.mrf.mxu0
  %v140 = vadd.f32 0.0, %v139
  %v141 = vpop.f32.mrf.mxu0
  %142 = vmatprep.mubr.bf16.mxu0 0
  %143 = vmatmul.mubr.bf16.gmra.mxu0 %v24
  %v144 = vpop.f32.mrf.mxu0
  %v145 = vadd.f32 0.0, %v144
  %v146 = vpop.f32.mrf.mxu0
  %v147 = vpop.f32.mrf.mxu0
  %v148 = vadd.f32 0.0, %v147
  %v149 = vpop.f32.mrf.mxu0
  %150 = vmatprep.mubr.bf16.mxu0 0
  %151 = vmatmul.mubr.bf16.gmra.mxu0 %v25
  %v152 = vpop.f32.mrf.mxu0
  %v153 = vadd.f32 0.0, %v152
  %v154 = vpop.f32.mrf.mxu0
  %v155 = vpop.f32.mrf.mxu0
  %v156 = vadd.f32 0.0, %v155
  %v157 = vpop.f32.mrf.mxu0
  %158 = vmatprep.mubr.bf16.mxu0 0
  %159 = vmatmul.mubr.bf16.gmra.mxu0 %v26
  %v160 = vpop.f32.mrf.mxu0
  %v161 = vadd.f32 0.0, %v160
  %v162 = vpop.f32.mrf.mxu0
  %v163 = vpop.f32.mrf.mxu0
  %v164 = vadd.f32 0.0, %v163
  %v165 = vpop.f32.mrf.mxu0
  %166 = vmatprep.mubr.bf16.mxu0 0
  %167 = vmatmul.mubr.bf16.gmra.mxu0 %v27
  %v168 = vpop.f32.mrf.mxu0
  %v169 = vadd.f32 0.0, %v168
  %v170 = vpop.f32.mrf.mxu0
  %v171 = vpop.f32.mrf.mxu0
  %v172 = vadd.f32 0.0, %v171
  %v173 = vpop.f32.mrf.mxu0
  %174 = vmatprep.mubr.bf16.mxu0 0
  %175 = vmatmul.mubr.bf16.gmra.mxu0 %v28
  %v176 = vpop.f32.mrf.mxu0
  %v177 = vadd.f32 0.0, %v176
  %v178 = vpop.f32.mrf.mxu0
  %v179 = vpop.f32.mrf.mxu0
  %v180 = vadd.f32 0.0, %v179
  %v181 = vpop.f32.mrf.mxu0
  %182 = vmatprep.mubr.bf16.mxu0 0
  %183 = vmatmul.mubr.bf16.gmra.mxu0 %v29
  %v184 = vpop.f32.mrf.mxu0
  %v185 = vadd.f32 0.0, %v184
  %v186 = vpop.f32.mrf.mxu0
  %v187 = vpop.f32.mrf.mxu0
  %v188 = vadd.f32 0.0, %v187
  %v189 = vpop.f32.mrf.mxu0
  %190 = vdwg.mxu0
  %v191 = vld [vmem:[%s2] sm:$0xff]
  %v192 = vld [vmem:[%s2 + $0x8] sm:$0xff]
  %v193 = vld [vmem:[%s2 + $0x10] sm:$0xff]
  %v194 = vld [vmem:[%s2 + $0x18] sm:$0xff]
  %v195 = vld [vmem:[%s2 + $0x20] sm:$0xff]
  %v196 = vld [vmem:[%s2 + $0x28] sm:$0xff]
  %v197 = vld [vmem:[%s2 + $0x30] sm:$0xff]
  %v198 = vld [vmem:[%s2 + $0x38] sm:$0xff]
  %v199 = vld [vmem:[%s2 + $0x40] sm:$0xff]
  %v200 = vld [vmem:[%s2 + $0x48] sm:$0xff]
  %v201 = vld [vmem:[%s2 + $0x50] sm:$0xff]
  %v202 = vld [vmem:[%s2 + $0x58] sm:$0xff]
  %v203 = vld [vmem:[%s2 + $0x60] sm:$0xff]
  %v204 = vld [vmem:[%s2 + $0x68] sm:$0xff]
  %v205 = vld [vmem:[%s2 + $0x70] sm:$0xff]
  %v206 = vld [vmem:[%s2 + $0x78] sm:$0xff]
  %208 = vset.pattern.permute.xlu0 0
  %209 = vperm.xlu0 %208, %v191
  %v210 = vpop.permute.xlu0 %209
  %213 = vset.pattern.permute.xlu0 0
  %214 = vperm.xlu0 %213, %v192
  %v215 = vpop.permute.xlu0 %214
  %218 = vset.pattern.permute.xlu0 0
  %219 = vperm.xlu0 %218, %v193
  %v220 = vpop.permute.xlu0 %219
  %223 = vset.pattern.permute.xlu0 0
  %224 = vperm.xlu0 %223, %v194
  %v225 = vpop.permute.xlu0 %224
  %228 = vset.pattern.permute.xlu0 0
  %229 = vperm.xlu0 %228, %v195
  %v230 = vpop.permute.xlu0 %229
  %233 = vset.pattern.permute.xlu0 0
  %234 = vperm.xlu0 %233, %v196
  %v235 = vpop.permute.xlu0 %234
  %238 = vset.pattern.permute.xlu0 0
  %239 = vperm.xlu0 %238, %v197
  %v240 = vpop.permute.xlu0 %239
  %243 = vset.pattern.permute.xlu0 0
  %244 = vperm.xlu0 %243, %v198
  %v245 = vpop.permute.xlu0 %244
  %248 = vset.pattern.permute.xlu0 0
  %249 = vperm.xlu0 %248, %v199
  %v250 = vpop.permute.xlu0 %249
  %253 = vset.pattern.permute.xlu0 0
  %254 = vperm.xlu0 %253, %v200
  %v255 = vpop.permute.xlu0 %254
  %258 = vset.pattern.permute.xlu0 0
  %259 = vperm.xlu0 %258, %v201
  %v260 = vpop.permute.xlu0 %259
  %263 = vset.pattern.permute.xlu0 0
  %264 = vperm.xlu0 %263, %v202
  %v265 = vpop.permute.xlu0 %264
  %268 = vset.pattern.permute.xlu0 0
  %269 = vperm.xlu0 %268, %v203
  %v270 = vpop.permute.xlu0 %269
  %273 = vset.pattern.permute.xlu0 0
  %274 = vperm.xlu0 %273, %v204
  %v275 = vpop.permute.xlu0 %274
  %278 = vset.pattern.permute.xlu0 0
  %279 = vperm.xlu0 %278, %v205
  %v280 = vpop.permute.xlu0 %279
  %283 = vset.pattern.permute.xlu0 0
  %284 = vperm.xlu0 %283, %v206
  %v285 = vpop.permute.xlu0 %284
  %v287 = vmul.f32 %v210, %v129
  %v288 = vmul.f32 %v215, %v132
  %v289 = vmul.f32 %v220, %v137
  %v290 = vmul.f32 %v225, %v140
  %v291 = vmul.f32 %v230, %v145
  %v292 = vmul.f32 %v235, %v148
  %v293 = vmul.f32 %v240, %v153
  %v294 = vmul.f32 %v245, %v156
  %v295 = vmul.f32 %v250, %v161
  %v296 = vmul.f32 %v255, %v164
  %v297 = vmul.f32 %v260, %v169
  %v298 = vmul.f32 %v265, %v172
  %v299 = vmul.f32 %v270, %v177
  %v300 = vmul.f32 %v275, %v180
  %v301 = vmul.f32 %v280, %v185
  %v302 = vmul.f32 %v285, %v188
  %v303 = vld [vmem:[%s3] sm:$0x1]
  %v305 = vlaneseq
  %v306 = vshrl.u32 %v305, 7
  %v307 = vsub.s32 0, %v306
  %v308 = vrot.slane %v303, %v307
  %v310 = vadd.f32 %v287, %v308
  %v311 = vadd.f32 %v288, %v308
  %v312 = vadd.f32 %v289, %v308
  %v313 = vadd.f32 %v290, %v308
  %v314 = vadd.f32 %v291, %v308
  %v315 = vadd.f32 %v292, %v308
  %v316 = vadd.f32 %v293, %v308
  %v317 = vadd.f32 %v294, %v308
  %v318 = vadd.f32 %v295, %v308
  %v319 = vadd.f32 %v296, %v308
  %v320 = vadd.f32 %v297, %v308
  %v321 = vadd.f32 %v298, %v308
  %v322 = vadd.f32 %v299, %v308
  %v323 = vadd.f32 %v300, %v308
  %v324 = vadd.f32 %v301, %v308
  %v325 = vadd.f32 %v302, %v308
  %326 = vst [vmem:[%s4] sm:$0xff] %v310
  %327 = vst [vmem:[%s4 + $0x8] sm:$0xff] %v311
  %328 = vst [vmem:[%s4 + $0x10] sm:$0xff] %v312
  %329 = vst [vmem:[%s4 + $0x18] sm:$0xff] %v313
  %330 = vst [vmem:[%s4 + $0x20] sm:$0xff] %v314
  %331 = vst [vmem:[%s4 + $0x28] sm:$0xff] %v315
  %332 = vst [vmem:[%s4 + $0x30] sm:$0xff] %v316
  %333 = vst [vmem:[%s4 + $0x38] sm:$0xff] %v317
  %334 = vst [vmem:[%s4 + $0x40] sm:$0xff] %v318
  %335 = vst [vmem:[%s4 + $0x48] sm:$0xff] %v319
  %336 = vst [vmem:[%s4 + $0x50] sm:$0xff] %v320
  %337 = vst [vmem:[%s4 + $0x58] sm:$0xff] %v321
  %338 = vst [vmem:[%s4 + $0x60] sm:$0xff] %v322
  %339 = vst [vmem:[%s4 + $0x68] sm:$0xff] %v323
  %340 = vst [vmem:[%s4 + $0x70] sm:$0xff] %v324
  %341 = vst [vmem:[%s4 + $0x78] sm:$0xff] %v325
  // Predicated region
  $region18: #{gcn_forward.5} parent=0 // pred_check
    _
  $region19: #{gcn_forward.5} parent=0 // pred_check_branch
    %343 = sbr.rel (0) target = $region21
  $region20: #{gcn_forward.5} parent=0 // pred_region
    _
  $region21: #{gcn_forward.5} parent=0 // pred_fallthru
    _
  // Predicated region
  $region22: #{gcn_forward.5} parent=0 // pred_check
    _
  $region23: #{gcn_forward.5} parent=0 // pred_check_branch
    %345 = sbr.rel (0) target = $region25
  $region24: #{gcn_forward.5} parent=0 // pred_region
    _
  $region25: #{gcn_forward.5} parent=0 // pred_fallthru
    _

// kernel: gcn_forward.3
$region0: #{gcn_forward.3}
  #allocation0 [shape = 'u32[]', space=smem, size = 0x4, offset = 0x4, fixed_abs, tag = 'smem constant byte address 0x4 - core index']
  #allocation1 [shape = 'u32[144,128]{1,0:T(1,128)}', space=vmem, size = 0x12000, scoped, tag = 'internal scratch']
  %s0 = inlined_call_operand.vmem [shape: bf16[128,128], index: 0, kind: input, shape index: {}]
  %s1 = inlined_call_operand.vmem [shape: bf16[128,128], index: 1, kind: input, shape index: {}]
  %s2 = inlined_call_operand.vmem [shape: f32[128,1], index: 2, kind: input, shape index: {}]
  %s3 = inlined_call_operand.vmem [shape: bf16[128,128], index: 3, kind: output, shape index: {}]
  %s4 = sld [smem:[#allocation0]]
  $region22: #{gcn_forward.3} parent=0
    _
  %s6 = ssub.s32 1, %s4
  %s7 = scalar_select 0, %s6, %s4
  // Predicated region
  $region2: #{gcn_forward.3} parent=0 // pred_check
    _
  $region3: #{gcn_forward.3} parent=0 // pred_check_branch
    %9 = sbr.rel (0) target = $region5
  $region4: #{gcn_forward.3} parent=0 // pred_region
    _
  $region5: #{gcn_forward.3} parent=0 // pred_fallthru
    _
  // Predicated region
  $region6: #{gcn_forward.3} parent=0 // pred_check
    _
  $region7: #{gcn_forward.3} parent=0 // pred_check_branch
    %11 = sbr.rel (0) target = $region9
  $region8: #{gcn_forward.3} parent=0 // pred_region
    _
  $region9: #{gcn_forward.3} parent=0 // pred_fallthru
    _
  // Predicated region
  $region10: #{gcn_forward.3} parent=0 // pred_check
    _
  $region11: #{gcn_forward.3} parent=0 // pred_check_branch
    %13 = sbr.rel (0) target = $region13
  $region12: #{gcn_forward.3} parent=0 // pred_region
    _
  $region13: #{gcn_forward.3} parent=0 // pred_fallthru
    _
  %v15 = vld [vmem:[%s0] sm:$0xf]
  %v16 = vld [vmem:[%s0 + $0x4] sm:$0xf]
  %v17 = vld [vmem:[%s0 + $0x8] sm:$0xf]
  %v18 = vld [vmem:[%s0 + $0xc] sm:$0xf]
  %v19 = vld [vmem:[%s0 + $0x10] sm:$0xf]
  %v20 = vld [vmem:[%s0 + $0x14] sm:$0xf]
  %v21 = vld [vmem:[%s0 + $0x18] sm:$0xf]
  %v22 = vld [vmem:[%s0 + $0x1c] sm:$0xf]
  %v23 = vld [vmem:[%s0 + $0x20] sm:$0xf]
  %v24 = vld [vmem:[%s0 + $0x24] sm:$0xf]
  %v25 = vld [vmem:[%s0 + $0x28] sm:$0xf]
  %v26 = vld [vmem:[%s0 + $0x2c] sm:$0xf]
  %v27 = vld [vmem:[%s0 + $0x30] sm:$0xf]
  %v28 = vld [vmem:[%s0 + $0x34] sm:$0xf]
  %v29 = vld [vmem:[%s0 + $0x38] sm:$0xf]
  %v30 = vld [vmem:[%s0 + $0x3c] sm:$0xf]
  %v31 = vld [vmem:[%s1] sm:$0xf]
  %v32 = vld [vmem:[%s1 + $0x4] sm:$0xf]
  %v33 = vld [vmem:[%s1 + $0x8] sm:$0xf]
  %v34 = vld [vmem:[%s1 + $0xc] sm:$0xf]
  %v35 = vld [vmem:[%s1 + $0x10] sm:$0xf]
  %v36 = vld [vmem:[%s1 + $0x14] sm:$0xf]
  %v37 = vld [vmem:[%s1 + $0x18] sm:$0xf]
  %v38 = vld [vmem:[%s1 + $0x1c] sm:$0xf]
  %v39 = vld [vmem:[%s1 + $0x20] sm:$0xf]
  %v40 = vld [vmem:[%s1 + $0x24] sm:$0xf]
  %v41 = vld [vmem:[%s1 + $0x28] sm:$0xf]
  %v42 = vld [vmem:[%s1 + $0x2c] sm:$0xf]
  %v43 = vld [vmem:[%s1 + $0x30] sm:$0xf]
  %v44 = vld [vmem:[%s1 + $0x34] sm:$0xf]
  %v45 = vld [vmem:[%s1 + $0x38] sm:$0xf]
  %v46 = vld [vmem:[%s1 + $0x3c] sm:$0xf]
  %v63 = vunpack.c.l.b16 %v15
  %v64 = vunpack.c.l.b16 %v16
  %v65 = vunpack.c.l.b16 %v17
  %v66 = vunpack.c.l.b16 %v18
  %v67 = vunpack.c.l.b16 %v19
  %v68 = vunpack.c.l.b16 %v20
  %v69 = vunpack.c.l.b16 %v21
  %v70 = vunpack.c.l.b16 %v22
  %v71 = vunpack.c.l.b16 %v23
  %v72 = vunpack.c.l.b16 %v24
  %v73 = vunpack.c.l.b16 %v25
  %v74 = vunpack.c.l.b16 %v26
  %v75 = vunpack.c.l.b16 %v27
  %v76 = vunpack.c.l.b16 %v28
  %v77 = vunpack.c.l.b16 %v29
  %v78 = vunpack.c.l.b16 %v30
  %v79 = vpack.c.b16 %v64, %v63
  %v80 = vpack.c.b16 %v66, %v65
  %v81 = vpack.c.b16 %v68, %v67
  %v82 = vpack.c.b16 %v70, %v69
  %v83 = vpack.c.b16 %v72, %v71
  %v84 = vpack.c.b16 %v74, %v73
  %v85 = vpack.c.b16 %v76, %v75
  %v86 = vpack.c.b16 %v78, %v77
  %v111 = vunpack.c.l.b16 %v31
  %v112 = vunpack.c.l.b16 %v32
  %v113 = vunpack.c.l.b16 %v33
  %v114 = vunpack.c.l.b16 %v34
  %v115 = vunpack.c.l.b16 %v35
  %v116 = vunpack.c.l.b16 %v36
  %v117 = vunpack.c.l.b16 %v37
  %v118 = vunpack.c.l.b16 %v38
  %v119 = vunpack.c.l.b16 %v39
  %v120 = vunpack.c.l.b16 %v40
  %v121 = vunpack.c.l.b16 %v41
  %v122 = vunpack.c.l.b16 %v42
  %v123 = vunpack.c.l.b16 %v43
  %v124 = vunpack.c.l.b16 %v44
  %v125 = vunpack.c.l.b16 %v45
  %v126 = vunpack.c.l.b16 %v46
  %v127 = vpack.c.b16 %v112, %v111
  %v128 = vpack.c.b16 %v114, %v113
  %v129 = vpack.c.b16 %v116, %v115
  %v130 = vpack.c.b16 %v118, %v117
  %v131 = vpack.c.b16 %v120, %v119
  %v132 = vpack.c.b16 %v122, %v121
  %v133 = vpack.c.b16 %v124, %v123
  %v134 = vpack.c.b16 %v126, %v125
  %143 = vmatprep.subr.bf16.mxu0 0
  %144 = vmatpush1.bf16.msra.mxu0 %v134
  %145 = vmatprep.subr.bf16.mxu0 0
  %146 = vmatpush1.bf16.msra.mxu0 %v133
  %147 = vmatprep.subr.bf16.mxu0 0
  %148 = vmatpush1.bf16.msra.mxu0 %v132
  %149 = vmatprep.subr.bf16.mxu0 0
  %150 = vmatpush1.bf16.msra.mxu0 %v131
  %151 = vmatprep.subr.bf16.mxu0 0
  %152 = vmatpush1.bf16.msra.mxu0 %v130
  %153 = vmatprep.subr.bf16.mxu0 0
  %154 = vmatpush1.bf16.msra.mxu0 %v129
  %155 = vmatprep.subr.bf16.mxu0 0
  %156 = vmatpush1.bf16.msra.mxu0 %v128
  %157 = vmatprep.subr.bf16.mxu0 0
  %158 = vmatpush1.bf16.msra.mxu0 %v127
  %159 = vmatprep.subr.bf16.mxu0 0
  %160 = vmatpush2.bf16.msra.mxu0 0
  %161 = vmatprep.subr.bf16.mxu0 0
  %162 = vmatpush2.bf16.msra.mxu0 0
  %163 = vmatprep.subr.bf16.mxu0 0
  %164 = vmatpush2.bf16.msra.mxu0 0
  %165 = vmatprep.subr.bf16.mxu0 0
  %166 = vmatpush2.bf16.msra.mxu0 0
  %167 = vmatprep.subr.bf16.mxu0 0
  %168 = vmatpush2.bf16.msra.mxu0 0
  %169 = vmatprep.subr.bf16.mxu0 0
  %170 = vmatpush2.bf16.msra.mxu0 0
  %171 = vmatprep.subr.bf16.mxu0 0
  %172 = vmatpush2.bf16.msra.mxu0 0
  %173 = vmatprep.subr.bf16.mxu0 0
  %174 = vmatpush2.bf16.msra.mxu0 0
  %175 = vmatprep.mubr.bf16.mxu0 0
  %176 = vmatmul.mubr.bf16.gmra.mxu0 %v79
  %v177 = vpop.f32.mrf.mxu0
  %v178 = vadd.f32 0.0, %v177
  %v179 = vpop.f32.mrf.mxu0
  %v180 = vpop.f32.mrf.mxu0
  %v181 = vadd.f32 0.0, %v180
  %v182 = vpop.f32.mrf.mxu0
  %183 = vmatprep.mubr.bf16.mxu0 0
  %184 = vmatmul.mubr.bf16.gmra.mxu0 %v80
  %v185 = vpop.f32.mrf.mxu0
  %v186 = vadd.f32 0.0, %v185
  %v187 = vpop.f32.mrf.mxu0
  %v188 = vpop.f32.mrf.mxu0
  %v189 = vadd.f32 0.0, %v188
  %v190 = vpop.f32.mrf.mxu0
  %191 = vmatprep.mubr.bf16.mxu0 0
  %192 = vmatmul.mubr.bf16.gmra.mxu0 %v81
  %v193 = vpop.f32.mrf.mxu0
  %v194 = vadd.f32 0.0, %v193
  %v195 = vpop.f32.mrf.mxu0
  %v196 = vpop.f32.mrf.mxu0
  %v197 = vadd.f32 0.0, %v196
  %v198 = vpop.f32.mrf.mxu0
  %199 = vmatprep.mubr.bf16.mxu0 0
  %200 = vmatmul.mubr.bf16.gmra.mxu0 %v82
  %v201 = vpop.f32.mrf.mxu0
  %v202 = vadd.f32 0.0, %v201
  %v203 = vpop.f32.mrf.mxu0
  %v204 = vpop.f32.mrf.mxu0
  %v205 = vadd.f32 0.0, %v204
  %v206 = vpop.f32.mrf.mxu0
  %207 = vmatprep.mubr.bf16.mxu0 0
  %208 = vmatmul.mubr.bf16.gmra.mxu0 %v83
  %v209 = vpop.f32.mrf.mxu0
  %v210 = vadd.f32 0.0, %v209
  %v211 = vpop.f32.mrf.mxu0
  %v212 = vpop.f32.mrf.mxu0
  %v213 = vadd.f32 0.0, %v212
  %v214 = vpop.f32.mrf.mxu0
  %215 = vmatprep.mubr.bf16.mxu0 0
  %216 = vmatmul.mubr.bf16.gmra.mxu0 %v84
  %v217 = vpop.f32.mrf.mxu0
  %v218 = vadd.f32 0.0, %v217
  %v219 = vpop.f32.mrf.mxu0
  %v220 = vpop.f32.mrf.mxu0
  %v221 = vadd.f32 0.0, %v220
  %v222 = vpop.f32.mrf.mxu0
  %223 = vmatprep.mubr.bf16.mxu0 0
  %224 = vmatmul.mubr.bf16.gmra.mxu0 %v85
  %v225 = vpop.f32.mrf.mxu0
  %v226 = vadd.f32 0.0, %v225
  %v227 = vpop.f32.mrf.mxu0
  %v228 = vpop.f32.mrf.mxu0
  %v229 = vadd.f32 0.0, %v228
  %v230 = vpop.f32.mrf.mxu0
  %231 = vmatprep.mubr.bf16.mxu0 0
  %232 = vmatmul.mubr.bf16.gmra.mxu0 %v86
  %v233 = vpop.f32.mrf.mxu0
  %v234 = vadd.f32 0.0, %v233
  %v235 = vpop.f32.mrf.mxu0
  %v236 = vpop.f32.mrf.mxu0
  %v237 = vadd.f32 0.0, %v236
  %v238 = vpop.f32.mrf.mxu0
  %239 = vdwg.mxu0
  %v240 = vld [vmem:[%s2] sm:$0xff]
  %v241 = vld [vmem:[%s2 + $0x8] sm:$0xff]
  %v242 = vld [vmem:[%s2 + $0x10] sm:$0xff]
  %v243 = vld [vmem:[%s2 + $0x18] sm:$0xff]
  %v244 = vld [vmem:[%s2 + $0x20] sm:$0xff]
  %v245 = vld [vmem:[%s2 + $0x28] sm:$0xff]
  %v246 = vld [vmem:[%s2 + $0x30] sm:$0xff]
  %v247 = vld [vmem:[%s2 + $0x38] sm:$0xff]
  %v248 = vld [vmem:[%s2 + $0x40] sm:$0xff]
  %v249 = vld [vmem:[%s2 + $0x48] sm:$0xff]
  %v250 = vld [vmem:[%s2 + $0x50] sm:$0xff]
  %v251 = vld [vmem:[%s2 + $0x58] sm:$0xff]
  %v252 = vld [vmem:[%s2 + $0x60] sm:$0xff]
  %v253 = vld [vmem:[%s2 + $0x68] sm:$0xff]
  %v254 = vld [vmem:[%s2 + $0x70] sm:$0xff]
  %v255 = vld [vmem:[%s2 + $0x78] sm:$0xff]
  %257 = vset.pattern.permute.xlu0 0
  %258 = vperm.xlu0 %257, %v240
  %v259 = vpop.permute.xlu0 %258
  %262 = vset.pattern.permute.xlu0 0
  %263 = vperm.xlu0 %262, %v241
  %v264 = vpop.permute.xlu0 %263
  %267 = vset.pattern.permute.xlu0 0
  %268 = vperm.xlu0 %267, %v242
  %v269 = vpop.permute.xlu0 %268
  %272 = vset.pattern.permute.xlu0 0
  %273 = vperm.xlu0 %272, %v243
  %v274 = vpop.permute.xlu0 %273
  %277 = vset.pattern.permute.xlu0 0
  %278 = vperm.xlu0 %277, %v244
  %v279 = vpop.permute.xlu0 %278
  %282 = vset.pattern.permute.xlu0 0
  %283 = vperm.xlu0 %282, %v245
  %v284 = vpop.permute.xlu0 %283
  %287 = vset.pattern.permute.xlu0 0
  %288 = vperm.xlu0 %287, %v246
  %v289 = vpop.permute.xlu0 %288
  %292 = vset.pattern.permute.xlu0 0
  %293 = vperm.xlu0 %292, %v247
  %v294 = vpop.permute.xlu0 %293
  %297 = vset.pattern.permute.xlu0 0
  %298 = vperm.xlu0 %297, %v248
  %v299 = vpop.permute.xlu0 %298
  %302 = vset.pattern.permute.xlu0 0
  %303 = vperm.xlu0 %302, %v249
  %v304 = vpop.permute.xlu0 %303
  %307 = vset.pattern.permute.xlu0 0
  %308 = vperm.xlu0 %307, %v250
  %v309 = vpop.permute.xlu0 %308
  %312 = vset.pattern.permute.xlu0 0
  %313 = vperm.xlu0 %312, %v251
  %v314 = vpop.permute.xlu0 %313
  %317 = vset.pattern.permute.xlu0 0
  %318 = vperm.xlu0 %317, %v252
  %v319 = vpop.permute.xlu0 %318
  %322 = vset.pattern.permute.xlu0 0
  %323 = vperm.xlu0 %322, %v253
  %v324 = vpop.permute.xlu0 %323
  %327 = vset.pattern.permute.xlu0 0
  %328 = vperm.xlu0 %327, %v254
  %v329 = vpop.permute.xlu0 %328
  %332 = vset.pattern.permute.xlu0 0
  %333 = vperm.xlu0 %332, %v255
  %v334 = vpop.permute.xlu0 %333
  %v336 = vmul.f32 %v259, %v178
  %v337 = vmul.f32 %v264, %v181
  %v338 = vmul.f32 %v269, %v186
  %v339 = vmul.f32 %v274, %v189
  %v340 = vmul.f32 %v279, %v194
  %v341 = vmul.f32 %v284, %v197
  %v342 = vmul.f32 %v289, %v202
  %v343 = vmul.f32 %v294, %v205
  %v344 = vmul.f32 %v299, %v210
  %v345 = vmul.f32 %v304, %v213
  %v346 = vmul.f32 %v309, %v218
  %v347 = vmul.f32 %v314, %v221
  %v348 = vmul.f32 %v319, %v226
  %v349 = vmul.f32 %v324, %v229
  %v350 = vmul.f32 %v329, %v234
  %v351 = vmul.f32 %v334, %v237
  %v352 = vpack.c.bf16 %v337, %v336
  %v353 = vpack.c.bf16 %v339, %v338
  %v354 = vpack.c.bf16 %v341, %v340
  %v355 = vpack.c.bf16 %v343, %v342
  %v356 = vpack.c.bf16 %v345, %v344
  %v357 = vpack.c.bf16 %v347, %v346
  %v358 = vpack.c.bf16 %v349, %v348
  %v359 = vpack.c.bf16 %v351, %v350
  %v368 = vunpack.c.l.b16 %v352
  %v369 = vunpack.c.h.b16 %v352
  %v370 = vunpack.c.l.b16 %v353
  %v371 = vunpack.c.h.b16 %v353
  %v372 = vunpack.c.l.b16 %v354
  %v373 = vunpack.c.h.b16 %v354
  %v374 = vunpack.c.l.b16 %v355
  %v375 = vunpack.c.h.b16 %v355
  %v376 = vunpack.c.l.b16 %v356
  %v377 = vunpack.c.h.b16 %v356
  %v378 = vunpack.c.l.b16 %v357
  %v379 = vunpack.c.h.b16 %v357
  %v380 = vunpack.c.l.b16 %v358
  %v381 = vunpack.c.h.b16 %v358
  %v382 = vunpack.c.l.b16 %v359
  %v383 = vunpack.c.h.b16 %v359
  %v384 = vpack.c.b16 %v368, %v368
  %v385 = vpack.c.b16 %v369, %v369
  %v386 = vpack.c.b16 %v370, %v370
  %v387 = vpack.c.b16 %v371, %v371
  %v388 = vpack.c.b16 %v372, %v372
  %v389 = vpack.c.b16 %v373, %v373
  %v390 = vpack.c.b16 %v374, %v374
  %v391 = vpack.c.b16 %v375, %v375
  %v392 = vpack.c.b16 %v376, %v376
  %v393 = vpack.c.b16 %v377, %v377
  %v394 = vpack.c.b16 %v378, %v378
  %v395 = vpack.c.b16 %v379, %v379
  %v396 = vpack.c.b16 %v380, %v380
  %v397 = vpack.c.b16 %v381, %v381
  %v398 = vpack.c.b16 %v382, %v382
  %v399 = vpack.c.b16 %v383, %v383
  %416 = vst [vmem:[%s3] sm:$0xf] %v384
  %417 = vst [vmem:[%s3 + $0x4] sm:$0xf] %v385
  %418 = vst [vmem:[%s3 + $0x8] sm:$0xf] %v386
  %419 = vst [vmem:[%s3 + $0xc] sm:$0xf] %v387
  %420 = vst [vmem:[%s3 + $0x10] sm:$0xf] %v388
  %421 = vst [vmem:[%s3 + $0x14] sm:$0xf] %v389
  %422 = vst [vmem:[%s3 + $0x18] sm:$0xf] %v390
  %423 = vst [vmem:[%s3 + $0x1c] sm:$0xf] %v391
  %424 = vst [vmem:[%s3 + $0x20] sm:$0xf] %v392
  %425 = vst [vmem:[%s3 + $0x24] sm:$0xf] %v393
  %426 = vst [vmem:[%s3 + $0x28] sm:$0xf] %v394
  %427 = vst [vmem:[%s3 + $0x2c] sm:$0xf] %v395
  %428 = vst [vmem:[%s3 + $0x30] sm:$0xf] %v396
  %429 = vst [vmem:[%s3 + $0x34] sm:$0xf] %v397
  %430 = vst [vmem:[%s3 + $0x38] sm:$0xf] %v398
  %431 = vst [vmem:[%s3 + $0x3c] sm:$0xf] %v399
  // Predicated region
  $region14: #{gcn_forward.3} parent=0 // pred_check
    _
  $region15: #{gcn_forward.3} parent=0 // pred_check_branch
    %433 = sbr.rel (0) target = $region17
  $region16: #{gcn_forward.3} parent=0 // pred_region
    _
  $region17: #{gcn_forward.3} parent=0 // pred_fallthru
    _
  // Predicated region
  $region18: #{gcn_forward.3} parent=0 // pred_check
    _
  $region19: #{gcn_forward.3} parent=0 // pred_check_branch
    %435 = sbr.rel (0) target = $region21
  $region20: #{gcn_forward.3} parent=0 // pred_region
    _
  $region21: #{gcn_forward.3} parent=0 // pred_fallthru
    _

// kernel: gcn_forward.4
$region0: #{gcn_forward.4}
  #allocation0 [shape = 'u32[]', space=smem, size = 0x4, offset = 0x4, fixed_abs, tag = 'smem constant byte address 0x4 - core index']
  #allocation1 [shape = 'u32[144,128]{1,0:T(1,128)}', space=vmem, size = 0x12000, scoped, tag = 'internal scratch']
  %s0 = inlined_call_operand.vmem [shape: s8[128,128], index: 0, kind: input, shape index: {}]
  %s1 = inlined_call_operand.vmem [shape: bf16[128,128], index: 1, kind: input, shape index: {}]
  %s2 = inlined_call_operand.vmem [shape: f32[128,1], index: 2, kind: input, shape index: {}]
  %s3 = inlined_call_operand.vmem [shape: f32[1,128], index: 3, kind: input, shape index: {}]
  %s4 = inlined_call_operand.vmem [shape: bf16[128,128], index: 4, kind: input, shape index: {}]
  %s5 = inlined_call_operand.vmem [shape: bf16[128,128], index: 5, kind: output, shape index: {}]
  %s6 = sld [smem:[#allocation0]]
  $region30: #{gcn_forward.4} parent=0
    _
  %s8 = ssub.s32 1, %s6
  %s9 = scalar_select 0, %s8, %s6
  // Predicated region
  $region2: #{gcn_forward.4} parent=0 // pred_check
    _
  $region3: #{gcn_forward.4} parent=0 // pred_check_branch
    %11 = sbr.rel (0) target = $region5
  $region4: #{gcn_forward.4} parent=0 // pred_region
    _
  $region5: #{gcn_forward.4} parent=0 // pred_fallthru
    _
  // Predicated region
  $region6: #{gcn_forward.4} parent=0 // pred_check
    _
  $region7: #{gcn_forward.4} parent=0 // pred_check_branch
    %13 = sbr.rel (0) target = $region9
  $region8: #{gcn_forward.4} parent=0 // pred_region
    _
  $region9: #{gcn_forward.4} parent=0 // pred_fallthru
    _
  // Predicated region
  $region10: #{gcn_forward.4} parent=0 // pred_check
    _
  $region11: #{gcn_forward.4} parent=0 // pred_check_branch
    %15 = sbr.rel (0) target = $region13
  $region12: #{gcn_forward.4} parent=0 // pred_region
    _
  $region13: #{gcn_forward.4} parent=0 // pred_fallthru
    _
  // Predicated region
  $region14: #{gcn_forward.4} parent=0 // pred_check
    _
  $region15: #{gcn_forward.4} parent=0 // pred_check_branch
    %17 = sbr.rel (0) target = $region17
  $region16: #{gcn_forward.4} parent=0 // pred_region
    _
  $region17: #{gcn_forward.4} parent=0 // pred_fallthru
    _
  // Predicated region
  $region18: #{gcn_forward.4} parent=0 // pred_check
    _
  $region19: #{gcn_forward.4} parent=0 // pred_check_branch
    %19 = sbr.rel (0) target = $region21
  $region20: #{gcn_forward.4} parent=0 // pred_region
    _
  $region21: #{gcn_forward.4} parent=0 // pred_fallthru
    _
  %v21 = vld [vmem:[%s0] sm:$0xff]
  %v22 = vld [vmem:[%s0 + $0x8] sm:$0xff]
  %v23 = vld [vmem:[%s0 + $0x10] sm:$0xff]
  %v24 = vld [vmem:[%s0 + $0x18] sm:$0xff]
  %v25 = vunpack.c.l.s8.bf16 %v21
  %v26 = vunpack.c.h.s8.bf16 %v21
  %v27 = vunpack.c.l.s8.bf16 %v22
  %v28 = vunpack.c.h.s8.bf16 %v22
  %v29 = vunpack.c.l.s8.bf16 %v23
  %v30 = vunpack.c.h.s8.bf16 %v23
  %v31 = vunpack.c.l.s8.bf16 %v24
  %v32 = vunpack.c.h.s8.bf16 %v24
  %v33 = vld [vmem:[%s1] sm:$0xf]
  %v34 = vld [vmem:[%s1 + $0x4] sm:$0xf]
  %v35 = vld [vmem:[%s1 + $0x8] sm:$0xf]
  %v36 = vld [vmem:[%s1 + $0xc] sm:$0xf]
  %v37 = vld [vmem:[%s1 + $0x10] sm:$0xf]
  %v38 = vld [vmem:[%s1 + $0x14] sm:$0xf]
  %v39 = vld [vmem:[%s1 + $0x18] sm:$0xf]
  %v40 = vld [vmem:[%s1 + $0x1c] sm:$0xf]
  %v41 = vld [vmem:[%s1 + $0x20] sm:$0xf]
  %v42 = vld [vmem:[%s1 + $0x24] sm:$0xf]
  %v43 = vld [vmem:[%s1 + $0x28] sm:$0xf]
  %v44 = vld [vmem:[%s1 + $0x2c] sm:$0xf]
  %v45 = vld [vmem:[%s1 + $0x30] sm:$0xf]
  %v46 = vld [vmem:[%s1 + $0x34] sm:$0xf]
  %v47 = vld [vmem:[%s1 + $0x38] sm:$0xf]
  %v48 = vld [vmem:[%s1 + $0x3c] sm:$0xf]
  %v65 = vunpack.c.l.b16 %v33
  %v66 = vunpack.c.l.b16 %v34
  %v67 = vunpack.c.l.b16 %v35
  %v68 = vunpack.c.l.b16 %v36
  %v69 = vunpack.c.l.b16 %v37
  %v70 = vunpack.c.l.b16 %v38
  %v71 = vunpack.c.l.b16 %v39
  %v72 = vunpack.c.l.b16 %v40
  %v73 = vunpack.c.l.b16 %v41
  %v74 = vunpack.c.l.b16 %v42
  %v75 = vunpack.c.l.b16 %v43
  %v76 = vunpack.c.l.b16 %v44
  %v77 = vunpack.c.l.b16 %v45
  %v78 = vunpack.c.l.b16 %v46
  %v79 = vunpack.c.l.b16 %v47
  %v80 = vunpack.c.l.b16 %v48
  %v81 = vpack.c.b16 %v66, %v65
  %v82 = vpack.c.b16 %v68, %v67
  %v83 = vpack.c.b16 %v70, %v69
  %v84 = vpack.c.b16 %v72, %v71
  %v85 = vpack.c.b16 %v74, %v73
  %v86 = vpack.c.b16 %v76, %v75
  %v87 = vpack.c.b16 %v78, %v77
  %v88 = vpack.c.b16 %v80, %v79
  %97 = vmatprep.subr.bf16.mxu0 0
  %98 = vmatpush1.bf16.msra.mxu0 %v88
  %99 = vmatprep.subr.bf16.mxu0 0
  %100 = vmatpush1.bf16.msra.mxu0 %v87
  %101 = vmatprep.subr.bf16.mxu0 0
  %102 = vmatpush1.bf16.msra.mxu0 %v86
  %103 = vmatprep.subr.bf16.mxu0 0
  %104 = vmatpush1.bf16.msra.mxu0 %v85
  %105 = vmatprep.subr.bf16.mxu0 0
  %106 = vmatpush1.bf16.msra.mxu0 %v84
  %107 = vmatprep.subr.bf16.mxu0 0
  %108 = vmatpush1.bf16.msra.mxu0 %v83
  %109 = vmatprep.subr.bf16.mxu0 0
  %110 = vmatpush1.bf16.msra.mxu0 %v82
  %111 = vmatprep.subr.bf16.mxu0 0
  %112 = vmatpush1.bf16.msra.mxu0 %v81
  %113 = vmatprep.subr.bf16.mxu0 0
  %114 = vmatpush2.bf16.msra.mxu0 0
  %115 = vmatprep.subr.bf16.mxu0 0
  %116 = vmatpush2.bf16.msra.mxu0 0
  %117 = vmatprep.subr.bf16.mxu0 0
  %118 = vmatpush2.bf16.msra.mxu0 0
  %119 = vmatprep.subr.bf16.mxu0 0
  %120 = vmatpush2.bf16.msra.mxu0 0
  %121 = vmatprep.subr.bf16.mxu0 0
  %122 = vmatpush2.bf16.msra.mxu0 0
  %123 = vmatprep.subr.bf16.mxu0 0
  %124 = vmatpush2.bf16.msra.mxu0 0
  %125 = vmatprep.subr.bf16.mxu0 0
  %126 = vmatpush2.bf16.msra.mxu0 0
  %127 = vmatprep.subr.bf16.mxu0 0
  %128 = vmatpush2.bf16.msra.mxu0 0
  %129 = vmatprep.mubr.bf16.mxu0 0
  %130 = vmatmul.mubr.bf16.gmra.mxu0 %v25
  %v131 = vpop.f32.mrf.mxu0
  %v132 = vadd.f32 0.0, %v131
  %v133 = vpop.f32.mrf.mxu0
  %v134 = vpop.f32.mrf.mxu0
  %v135 = vadd.f32 0.0, %v134
  %v136 = vpop.f32.mrf.mxu0
  %137 = vmatprep.mubr.bf16.mxu0 0
  %138 = vmatmul.mubr.bf16.gmra.mxu0 %v26
  %v139 = vpop.f32.mrf.mxu0
  %v140 = vadd.f32 0.0, %v139
  %v141 = vpop.f32.mrf.mxu0
  %v142 = vpop.f32.mrf.mxu0
  %v143 = vadd.f32 0.0, %v142
  %v144 = vpop.f32.mrf.mxu0
  %145 = vmatprep.mubr.bf16.mxu0 0
  %146 = vmatmul.mubr.bf16.gmra.mxu0 %v27
  %v147 = vpop.f32.mrf.mxu0
  %v148 = vadd.f32 0.0, %v147
  %v149 = vpop.f32.mrf.mxu0
  %v150 = vpop.f32.mrf.mxu0
  %v151 = vadd.f32 0.0, %v150
  %v152 = vpop.f32.mrf.mxu0
  %153 = vmatprep.mubr.bf16.mxu0 0
  %154 = vmatmul.mubr.bf16.gmra.mxu0 %v28
  %v155 = vpop.f32.mrf.mxu0
  %v156 = vadd.f32 0.0, %v155
  %v157 = vpop.f32.mrf.mxu0
  %v158 = vpop.f32.mrf.mxu0
  %v159 = vadd.f32 0.0, %v158
  %v160 = vpop.f32.mrf.mxu0
  %161 = vmatprep.mubr.bf16.mxu0 0
  %162 = vmatmul.mubr.bf16.gmra.mxu0 %v29
  %v163 = vpop.f32.mrf.mxu0
  %v164 = vadd.f32 0.0, %v163
  %v165 = vpop.f32.mrf.mxu0
  %v166 = vpop.f32.mrf.mxu0
  %v167 = vadd.f32 0.0, %v166
  %v168 = vpop.f32.mrf.mxu0
  %169 = vmatprep.mubr.bf16.mxu0 0
  %170 = vmatmul.mubr.bf16.gmra.mxu0 %v30
  %v171 = vpop.f32.mrf.mxu0
  %v172 = vadd.f32 0.0, %v171
  %v173 = vpop.f32.mrf.mxu0
  %v174 = vpop.f32.mrf.mxu0
  %v175 = vadd.f32 0.0, %v174
  %v176 = vpop.f32.mrf.mxu0
  %177 = vmatprep.mubr.bf16.mxu0 0
  %178 = vmatmul.mubr.bf16.gmra.mxu0 %v31
  %v179 = vpop.f32.mrf.mxu0
  %v180 = vadd.f32 0.0, %v179
  %v181 = vpop.f32.mrf.mxu0
  %v182 = vpop.f32.mrf.mxu0
  %v183 = vadd.f32 0.0, %v182
  %v184 = vpop.f32.mrf.mxu0
  %185 = vmatprep.mubr.bf16.mxu0 0
  %186 = vmatmul.mubr.bf16.gmra.mxu0 %v32
  %v187 = vpop.f32.mrf.mxu0
  %v188 = vadd.f32 0.0, %v187
  %v189 = vpop.f32.mrf.mxu0
  %v190 = vpop.f32.mrf.mxu0
  %v191 = vadd.f32 0.0, %v190
  %v192 = vpop.f32.mrf.mxu0
  %193 = vdwg.mxu0
  %v194 = vld [vmem:[%s2] sm:$0xff]
  %v195 = vld [vmem:[%s2 + $0x8] sm:$0xff]
  %v196 = vld [vmem:[%s2 + $0x10] sm:$0xff]
  %v197 = vld [vmem:[%s2 + $0x18] sm:$0xff]
  %v198 = vld [vmem:[%s2 + $0x20] sm:$0xff]
  %v199 = vld [vmem:[%s2 + $0x28] sm:$0xff]
  %v200 = vld [vmem:[%s2 + $0x30] sm:$0xff]
  %v201 = vld [vmem:[%s2 + $0x38] sm:$0xff]
  %v202 = vld [vmem:[%s2 + $0x40] sm:$0xff]
  %v203 = vld [vmem:[%s2 + $0x48] sm:$0xff]
  %v204 = vld [vmem:[%s2 + $0x50] sm:$0xff]
  %v205 = vld [vmem:[%s2 + $0x58] sm:$0xff]
  %v206 = vld [vmem:[%s2 + $0x60] sm:$0xff]
  %v207 = vld [vmem:[%s2 + $0x68] sm:$0xff]
  %v208 = vld [vmem:[%s2 + $0x70] sm:$0xff]
  %v209 = vld [vmem:[%s2 + $0x78] sm:$0xff]
  %211 = vset.pattern.permute.xlu0 0
  %212 = vperm.xlu0 %211, %v194
  %v213 = vpop.permute.xlu0 %212
  %216 = vset.pattern.permute.xlu0 0
  %217 = vperm.xlu0 %216, %v195
  %v218 = vpop.permute.xlu0 %217
  %221 = vset.pattern.permute.xlu0 0
  %222 = vperm.xlu0 %221, %v196
  %v223 = vpop.permute.xlu0 %222
  %226 = vset.pattern.permute.xlu0 0
  %227 = vperm.xlu0 %226, %v197
  %v228 = vpop.permute.xlu0 %227
  %231 = vset.pattern.permute.xlu0 0
  %232 = vperm.xlu0 %231, %v198
  %v233 = vpop.permute.xlu0 %232
  %236 = vset.pattern.permute.xlu0 0
  %237 = vperm.xlu0 %236, %v199
  %v238 = vpop.permute.xlu0 %237
  %241 = vset.pattern.permute.xlu0 0
  %242 = vperm.xlu0 %241, %v200
  %v243 = vpop.permute.xlu0 %242
  %246 = vset.pattern.permute.xlu0 0
  %247 = vperm.xlu0 %246, %v201
  %v248 = vpop.permute.xlu0 %247
  %251 = vset.pattern.permute.xlu0 0
  %252 = vperm.xlu0 %251, %v202
  %v253 = vpop.permute.xlu0 %252
  %256 = vset.pattern.permute.xlu0 0
  %257 = vperm.xlu0 %256, %v203
  %v258 = vpop.permute.xlu0 %257
  %261 = vset.pattern.permute.xlu0 0
  %262 = vperm.xlu0 %261, %v204
  %v263 = vpop.permute.xlu0 %262
  %266 = vset.pattern.permute.xlu0 0
  %267 = vperm.xlu0 %266, %v205
  %v268 = vpop.permute.xlu0 %267
  %271 = vset.pattern.permute.xlu0 0
  %272 = vperm.xlu0 %271, %v206
  %v273 = vpop.permute.xlu0 %272
  %276 = vset.pattern.permute.xlu0 0
  %277 = vperm.xlu0 %276, %v207
  %v278 = vpop.permute.xlu0 %277
  %281 = vset.pattern.permute.xlu0 0
  %282 = vperm.xlu0 %281, %v208
  %v283 = vpop.permute.xlu0 %282
  %286 = vset.pattern.permute.xlu0 0
  %287 = vperm.xlu0 %286, %v209
  %v288 = vpop.permute.xlu0 %287
  %v290 = vmul.f32 %v213, %v132
  %v291 = vmul.f32 %v218, %v135
  %v292 = vmul.f32 %v223, %v140
  %v293 = vmul.f32 %v228, %v143
  %v294 = vmul.f32 %v233, %v148
  %v295 = vmul.f32 %v238, %v151
  %v296 = vmul.f32 %v243, %v156
  %v297 = vmul.f32 %v248, %v159
  %v298 = vmul.f32 %v253, %v164
  %v299 = vmul.f32 %v258, %v167
  %v300 = vmul.f32 %v263, %v172
  %v301 = vmul.f32 %v268, %v175
  %v302 = vmul.f32 %v273, %v180
  %v303 = vmul.f32 %v278, %v183
  %v304 = vmul.f32 %v283, %v188
  %v305 = vmul.f32 %v288, %v191
  %v306 = vld [vmem:[%s3] sm:$0x1]
  %v308 = vlaneseq
  %v309 = vshrl.u32 %v308, 7
  %v310 = vsub.s32 0, %v309
  %v311 = vrot.slane %v306, %v310
  %v313 = vadd.f32 %v290, %v311
  %v314 = vadd.f32 %v291, %v311
  %v315 = vadd.f32 %v292, %v311
  %v316 = vadd.f32 %v293, %v311
  %v317 = vadd.f32 %v294, %v311
  %v318 = vadd.f32 %v295, %v311
  %v319 = vadd.f32 %v296, %v311
  %v320 = vadd.f32 %v297, %v311
  %v321 = vadd.f32 %v298, %v311
  %v322 = vadd.f32 %v299, %v311
  %v323 = vadd.f32 %v300, %v311
  %v324 = vadd.f32 %v301, %v311
  %v325 = vadd.f32 %v302, %v311
  %v326 = vadd.f32 %v303, %v311
  %v327 = vadd.f32 %v304, %v311
  %v328 = vadd.f32 %v305, %v311
  %v329 = vmax.f32 %v313, 0.0
  %v330 = vmax.f32 %v314, 0.0
  %v331 = vmax.f32 %v315, 0.0
  %v332 = vmax.f32 %v316, 0.0
  %v333 = vmax.f32 %v317, 0.0
  %v334 = vmax.f32 %v318, 0.0
  %v335 = vmax.f32 %v319, 0.0
  %v336 = vmax.f32 %v320, 0.0
  %v337 = vmax.f32 %v321, 0.0
  %v338 = vmax.f32 %v322, 0.0
  %v339 = vmax.f32 %v323, 0.0
  %v340 = vmax.f32 %v324, 0.0
  %v341 = vmax.f32 %v325, 0.0
  %v342 = vmax.f32 %v326, 0.0
  %v343 = vmax.f32 %v327, 0.0
  %v344 = vmax.f32 %v328, 0.0
  %v345 = vmul.f32 %v213, %v329
  %v346 = vmul.f32 %v218, %v330
  %v347 = vmul.f32 %v223, %v331
  %v348 = vmul.f32 %v228, %v332
  %v349 = vmul.f32 %v233, %v333
  %v350 = vmul.f32 %v238, %v334
  %v351 = vmul.f32 %v243, %v335
  %v352 = vmul.f32 %v248, %v336
  %v353 = vmul.f32 %v253, %v337
  %v354 = vmul.f32 %v258, %v338
  %v355 = vmul.f32 %v263, %v339
  %v356 = vmul.f32 %v268, %v340
  %v357 = vmul.f32 %v273, %v341
  %v358 = vmul.f32 %v278, %v342
  %v359 = vmul.f32 %v283, %v343
  %v360 = vmul.f32 %v288, %v344
  %v361 = vpack.c.bf16 %v346, %v345
  %v362 = vpack.c.bf16 %v348, %v347
  %v363 = vpack.c.bf16 %v350, %v349
  %v364 = vpack.c.bf16 %v352, %v351
  %v365 = vpack.c.bf16 %v354, %v353
  %v366 = vpack.c.bf16 %v356, %v355
  %v367 = vpack.c.bf16 %v358, %v357
  %v368 = vpack.c.bf16 %v360, %v359
  %v369 = vld [vmem:[%s4] sm:$0xf]
  %v370 = vld [vmem:[%s4 + $0x4] sm:$0xf]
  %v371 = vld [vmem:[%s4 + $0x8] sm:$0xf]
  %v372 = vld [vmem:[%s4 + $0xc] sm:$0xf]
  %v373 = vld [vmem:[%s4 + $0x10] sm:$0xf]
  %v374 = vld [vmem:[%s4 + $0x14] sm:$0xf]
  %v375 = vld [vmem:[%s4 + $0x18] sm:$0xf]
  %v376 = vld [vmem:[%s4 + $0x1c] sm:$0xf]
  %v377 = vld [vmem:[%s4 + $0x20] sm:$0xf]
  %v378 = vld [vmem:[%s4 + $0x24] sm:$0xf]
  %v379 = vld [vmem:[%s4 + $0x28] sm:$0xf]
  %v380 = vld [vmem:[%s4 + $0x2c] sm:$0xf]
  %v381 = vld [vmem:[%s4 + $0x30] sm:$0xf]
  %v382 = vld [vmem:[%s4 + $0x34] sm:$0xf]
  %v383 = vld [vmem:[%s4 + $0x38] sm:$0xf]
  %v384 = vld [vmem:[%s4 + $0x3c] sm:$0xf]
  %v401 = vunpack.c.l.b16 %v369
  %v402 = vunpack.c.l.b16 %v370
  %v403 = vunpack.c.l.b16 %v371
  %v404 = vunpack.c.l.b16 %v372
  %v405 = vunpack.c.l.b16 %v373
  %v406 = vunpack.c.l.b16 %v374
  %v407 = vunpack.c.l.b16 %v375
  %v408 = vunpack.c.l.b16 %v376
  %v409 = vunpack.c.l.b16 %v377
  %v410 = vunpack.c.l.b16 %v378
  %v411 = vunpack.c.l.b16 %v379
  %v412 = vunpack.c.l.b16 %v380
  %v413 = vunpack.c.l.b16 %v381
  %v414 = vunpack.c.l.b16 %v382
  %v415 = vunpack.c.l.b16 %v383
  %v416 = vunpack.c.l.b16 %v384
  %v417 = vpack.c.b16 %v402, %v401
  %v418 = vpack.c.b16 %v404, %v403
  %v419 = vpack.c.b16 %v406, %v405
  %v420 = vpack.c.b16 %v408, %v407
  %v421 = vpack.c.b16 %v410, %v409
  %v422 = vpack.c.b16 %v412, %v411
  %v423 = vpack.c.b16 %v414, %v413
  %v424 = vpack.c.b16 %v416, %v415
  %433 = vmatprep.subr.bf16.mxu0 0
  %434 = vmatpush1.bf16.msra.mxu0 %v424
  %435 = vmatprep.subr.bf16.mxu0 0
  %436 = vmatpush1.bf16.msra.mxu0 %v423
  %437 = vmatprep.subr.bf16.mxu0 0
  %438 = vmatpush1.bf16.msra.mxu0 %v422
  %439 = vmatprep.subr.bf16.mxu0 0
  %440 = vmatpush1.bf16.msra.mxu0 %v421
  %441 = vmatprep.subr.bf16.mxu0 0
  %442 = vmatpush1.bf16.msra.mxu0 %v420
  %443 = vmatprep.subr.bf16.mxu0 0
  %444 = vmatpush1.bf16.msra.mxu0 %v419
  %445 = vmatprep.subr.bf16.mxu0 0
  %446 = vmatpush1.bf16.msra.mxu0 %v418
  %447 = vmatprep.subr.bf16.mxu0 0
  %448 = vmatpush1.bf16.msra.mxu0 %v417
  %449 = vmatprep.subr.bf16.mxu0 0
  %450 = vmatpush2.bf16.msra.mxu0 0
  %451 = vmatprep.subr.bf16.mxu0 0
  %452 = vmatpush2.bf16.msra.mxu0 0
  %453 = vmatprep.subr.bf16.mxu0 0
  %454 = vmatpush2.bf16.msra.mxu0 0
  %455 = vmatprep.subr.bf16.mxu0 0
  %456 = vmatpush2.bf16.msra.mxu0 0
  %457 = vmatprep.subr.bf16.mxu0 0
  %458 = vmatpush2.bf16.msra.mxu0 0
  %459 = vmatprep.subr.bf16.mxu0 0
  %460 = vmatpush2.bf16.msra.mxu0 0
  %461 = vmatprep.subr.bf16.mxu0 0
  %462 = vmatpush2.bf16.msra.mxu0 0
  %463 = vmatprep.subr.bf16.mxu0 0
  %464 = vmatpush2.bf16.msra.mxu0 0
  %465 = vmatprep.mubr.bf16.mxu0 0
  %466 = vmatmul.mubr.bf16.gmra.mxu0 %v361
  %v467 = vpop.f32.mrf.mxu0
  %v468 = vadd.f32 0.0, %v467
  %v469 = vpop.f32.mrf.mxu0
  %v470 = vpop.f32.mrf.mxu0
  %v471 = vadd.f32 0.0, %v470
  %v472 = vpop.f32.mrf.mxu0
  %473 = vmatprep.mubr.bf16.mxu0 0
  %474 = vmatmul.mubr.bf16.gmra.mxu0 %v362
  %v475 = vpop.f32.mrf.mxu0
  %v476 = vadd.f32 0.0, %v475
  %v477 = vpop.f32.mrf.mxu0
  %v478 = vpop.f32.mrf.mxu0
  %v479 = vadd.f32 0.0, %v478
  %v480 = vpop.f32.mrf.mxu0
  %481 = vmatprep.mubr.bf16.mxu0 0
  %482 = vmatmul.mubr.bf16.gmra.mxu0 %v363
  %v483 = vpop.f32.mrf.mxu0
  %v484 = vadd.f32 0.0, %v483
  %v485 = vpop.f32.mrf.mxu0
  %v486 = vpop.f32.mrf.mxu0
  %v487 = vadd.f32 0.0, %v486
  %v488 = vpop.f32.mrf.mxu0
  %489 = vmatprep.mubr.bf16.mxu0 0
  %490 = vmatmul.mubr.bf16.gmra.mxu0 %v364
  %v491 = vpop.f32.mrf.mxu0
  %v492 = vadd.f32 0.0, %v491
  %v493 = vpop.f32.mrf.mxu0
  %v494 = vpop.f32.mrf.mxu0
  %v495 = vadd.f32 0.0, %v494
  %v496 = vpop.f32.mrf.mxu0
  %497 = vmatprep.mubr.bf16.mxu0 0
  %498 = vmatmul.mubr.bf16.gmra.mxu0 %v365
  %v499 = vpop.f32.mrf.mxu0
  %v500 = vadd.f32 0.0, %v499
  %v501 = vpop.f32.mrf.mxu0
  %v502 = vpop.f32.mrf.mxu0
  %v503 = vadd.f32 0.0, %v502
  %v504 = vpop.f32.mrf.mxu0
  %505 = vmatprep.mubr.bf16.mxu0 0
  %506 = vmatmul.mubr.bf16.gmra.mxu0 %v366
  %v507 = vpop.f32.mrf.mxu0
  %v508 = vadd.f32 0.0, %v507
  %v509 = vpop.f32.mrf.mxu0
  %v510 = vpop.f32.mrf.mxu0
  %v511 = vadd.f32 0.0, %v510
  %v512 = vpop.f32.mrf.mxu0
  %513 = vmatprep.mubr.bf16.mxu0 0
  %514 = vmatmul.mubr.bf16.gmra.mxu0 %v367
  %v515 = vpop.f32.mrf.mxu0
  %v516 = vadd.f32 0.0, %v515
  %v517 = vpop.f32.mrf.mxu0
  %v518 = vpop.f32.mrf.mxu0
  %v519 = vadd.f32 0.0, %v518
  %v520 = vpop.f32.mrf.mxu0
  %521 = vmatprep.mubr.bf16.mxu0 0
  %522 = vmatmul.mubr.bf16.gmra.mxu0 %v368
  %v523 = vpop.f32.mrf.mxu0
  %v524 = vadd.f32 0.0, %v523
  %v525 = vpop.f32.mrf.mxu0
  %v526 = vpop.f32.mrf.mxu0
  %v527 = vadd.f32 0.0, %v526
  %v528 = vpop.f32.mrf.mxu0
  %529 = vdwg.mxu0
  %v530 = vpack.c.bf16 %v471, %v468
  %v531 = vpack.c.bf16 %v479, %v476
  %v532 = vpack.c.bf16 %v487, %v484
  %v533 = vpack.c.bf16 %v495, %v492
  %v534 = vpack.c.bf16 %v503, %v500
  %v535 = vpack.c.bf16 %v511, %v508
  %v536 = vpack.c.bf16 %v519, %v516
  %v537 = vpack.c.bf16 %v527, %v524
  %v546 = vunpack.c.l.b16 %v530
  %v547 = vunpack.c.h.b16 %v530
  %v548 = vunpack.c.l.b16 %v531
  %v549 = vunpack.c.h.b16 %v531
  %v550 = vunpack.c.l.b16 %v532
  %v551 = vunpack.c.h.b16 %v532
  %v552 = vunpack.c.l.b16 %v533
  %v553 = vunpack.c.h.b16 %v533
  %v554 = vunpack.c.l.b16 %v534
  %v555 = vunpack.c.h.b16 %v534
  %v556 = vunpack.c.l.b16 %v535
  %v557 = vunpack.c.h.b16 %v535
  %v558 = vunpack.c.l.b16 %v536
  %v559 = vunpack.c.h.b16 %v536
  %v560 = vunpack.c.l.b16 %v537
  %v561 = vunpack.c.h.b16 %v537
  %v562 = vpack.c.b16 %v546, %v546
  %v563 = vpack.c.b16 %v547, %v547
  %v564 = vpack.c.b16 %v548, %v548
  %v565 = vpack.c.b16 %v549, %v549
  %v566 = vpack.c.b16 %v550, %v550
  %v567 = vpack.c.b16 %v551, %v551
  %v568 = vpack.c.b16 %v552, %v552
  %v569 = vpack.c.b16 %v553, %v553
  %v570 = vpack.c.b16 %v554, %v554
  %v571 = vpack.c.b16 %v555, %v555
  %v572 = vpack.c.b16 %v556, %v556
  %v573 = vpack.c.b16 %v557, %v557
  %v574 = vpack.c.b16 %v558, %v558
  %v575 = vpack.c.b16 %v559, %v559
  %v576 = vpack.c.b16 %v560, %v560
  %v577 = vpack.c.b16 %v561, %v561
  %594 = vst [vmem:[%s5] sm:$0xf] %v562
  %595 = vst [vmem:[%s5 + $0x4] sm:$0xf] %v563
  %596 = vst [vmem:[%s5 + $0x8] sm:$0xf] %v564
  %597 = vst [vmem:[%s5 + $0xc] sm:$0xf] %v565
  %598 = vst [vmem:[%s5 + $0x10] sm:$0xf] %v566
  %599 = vst [vmem:[%s5 + $0x14] sm:$0xf] %v567
  %600 = vst [vmem:[%s5 + $0x18] sm:$0xf] %v568
  %601 = vst [vmem:[%s5 + $0x1c] sm:$0xf] %v569
  %602 = vst [vmem:[%s5 + $0x20] sm:$0xf] %v570
  %603 = vst [vmem:[%s5 + $0x24] sm:$0xf] %v571
  %604 = vst [vmem:[%s5 + $0x28] sm:$0xf] %v572
  %605 = vst [vmem:[%s5 + $0x2c] sm:$0xf] %v573
  %606 = vst [vmem:[%s5 + $0x30] sm:$0xf] %v574
  %607 = vst [vmem:[%s5 + $0x34] sm:$0xf] %v575
  %608 = vst [vmem:[%s5 + $0x38] sm:$0xf] %v576
  %609 = vst [vmem:[%s5 + $0x3c] sm:$0xf] %v577
  // Predicated region
  $region22: #{gcn_forward.4} parent=0 // pred_check
    _
  $region23: #{gcn_forward.4} parent=0 // pred_check_branch
    %611 = sbr.rel (0) target = $region25
  $region24: #{gcn_forward.4} parent=0 // pred_region
    _
  $region25: #{gcn_forward.4} parent=0 // pred_fallthru
    _
  // Predicated region
  $region26: #{gcn_forward.4} parent=0 // pred_check
    _
  $region27: #{gcn_forward.4} parent=0 // pred_check_branch
    %613 = sbr.rel (0) target = $region29
  $region28: #{gcn_forward.4} parent=0 // pred_region
    _
  $region29: #{gcn_forward.4} parent=0 // pred_fallthru
    _

</llo_original>
